<compile_context>
chip_gen: v7x
topology: tpu7x:2x2x1
jax: 0.10.0
libtpu: 0.0.40
codegen_flags: <defaults>
</compile_context>

<pallas_src>
import jax
import jax.numpy as jnp
from jax.experimental import pallas as pl
from jax.experimental.pallas import tpu as pltpu


def _gated_rgcn_kernel(adj_ref, inv_deg_ref, x_ref, w_rel_ref, w_root_ref,
                       b_ref, w_att_u_ref, w_att_x_ref, b_att_ref, out_ref):
    bf16 = jnp.bfloat16
    f32 = jnp.float32
    R = w_rel_ref.shape[0]
    N = x_ref.shape[0]

    x_f32 = x_ref[...]
    x_bf = x_f32.astype(bf16)

    # One MXU contraction covers neighbor aggregation for ALL relations:
    # adj is (R*N, N) bf16 edge COUNTS (exact in bf16), row block r == cnt_r.
    agg = jnp.dot(adj_ref[...], x_bf, preferred_element_type=f32)   # (R*N, C)

    # Mean normalization: exact f32 per-(node, relation) row scale on the VPU
    # (inv_deg[r*N + i] = 1 / max(deg_r(i), 1)).
    agg = agg * inv_deg_ref[...]

    # Root transform + bias, then per-relation projections accumulated into
    # the same f32 value as a chain of accumulating dots (R is static ->
    # trace-time unrolled; MRB-accumulates in place on v7x).
    u0 = jnp.dot(x_bf, w_root_ref[...], preferred_element_type=f32) + b_ref[...]
    for r in range(R):
        u0 = u0 + jnp.dot(agg[r * N:(r + 1) * N, :].astype(bf16),
                          w_rel_ref[r], preferred_element_type=f32)

    # Attention gate:  cat([u_0, x], dim=1) @ W_att^T + b_att
    #   == sum_c u0 * W_att[:, :C] + sum_c x * W_att[:, C:]  + b_att
    # VPU FMA + XLU row reduce; a lane-width-1 MXU matmul would waste the
    # systolic array and block the real matmuls' slot.
    logits = jnp.sum(u0 * w_att_u_ref[...] + x_f32 * w_att_x_ref[...],
                     axis=-1, keepdims=True) + b_att_ref[0, 0]       # (N, 1)
    a1 = jax.nn.sigmoid(logits)

    out_ref[...] = (jnp.tanh(u0) * a1 + x_f32 * (1.0 - a1)).astype(out_ref.dtype)


@jax.jit
def gated_rgcn_pallas(adj_cnt_bf16, inv_deg, x, w_rel_bf16, w_root_bf16, bias,
                      w_att_u_row, w_att_x_row, b_att):
    """adj_cnt_bf16: (R*N, N) bf16 edge counts; inv_deg: (R*N, 1) f32;
    x: (N, C) f32; weights pre-cast to bf16 in the caller."""
    RN, N = adj_cnt_bf16.shape
    C = x.shape[1]
    R = RN // N

    return pl.pallas_call(
        _gated_rgcn_kernel,
        out_shape=jax.ShapeDtypeStruct((N, C), jnp.float32),
        grid=(1,),
        in_specs=[
            pl.BlockSpec((R * N, N), lambda i: (0, 0)),         # adj counts (bf16)
            pl.BlockSpec((R * N, 1), lambda i: (0, 0)),         # 1/deg (f32)
            pl.BlockSpec((N, C), lambda i: (0, 0)),             # x
            pl.BlockSpec((R, C, C), lambda i: (0, 0, 0)),       # W_rel (bf16)
            pl.BlockSpec((C, C), lambda i: (0, 0)),             # W_root (bf16)
            pl.BlockSpec((1, C), lambda i: (0, 0)),             # bias
            pl.BlockSpec((1, C), lambda i: (0, 0)),             # W_att (u0 half)
            pl.BlockSpec((1, C), lambda i: (0, 0)),             # W_att (x half)
            pl.BlockSpec(memory_space=pltpu.MemorySpace.SMEM),  # b_att scalar
        ],
        out_specs=pl.BlockSpec((N, C), lambda i: (0, 0)),
        compiler_params=pltpu.CompilerParams(
            dimension_semantics=("parallel",)),
    )(adj_cnt_bf16, inv_deg, x, w_rel_bf16, w_root_bf16, bias,
      w_att_u_row, w_att_x_row, b_att)


def build_relation_adjacency_counts(edge_index, edge_type, num_nodes,
                                    num_relations):
    """Dense per-relation edge-count matrix cnt[r, i, j] (#edges j->i of type r)
    and the exact f32 mean-normalization factor 1/max(deg_r(i), 1)."""
    # TODO(synk): the sparse edge_index scatter has no clean Pallas equivalent
    # here; it is plain-JAX glue.  At real graph sizes a scalar-prefetch CSR
    # kernel (row pointers / edge ids in SMEM driving gathers) should replace
    # this dense O(R*N^2) adjacency entirely.
    src = edge_index[0]
    dst = edge_index[1]
    cnt = jnp.zeros((num_relations, num_nodes, num_nodes), jnp.float32)
    cnt = cnt.at[edge_type, dst, src].add(1.0)
    deg = cnt.sum(axis=2, keepdims=True)                  # (R, N, 1)
    inv_deg = 1.0 / jnp.maximum(deg, 1.0)
    return cnt, inv_deg


def gated_rgcn_reference_f32(adj_norm, x, w_rel, w_root, bias,
                             w_att_u_row, w_att_x_row, b_att):
    """Pure-f32 reference of the module math (semantic check)."""
    agg = jnp.einsum('rij,jc->ric', adj_norm, x)
    u0 = jnp.einsum('ric,rcd->id', agg, w_rel) + x @ w_root + bias
    logits = jnp.sum(u0 * w_att_u_row + x * w_att_x_row,
                     axis=-1, keepdims=True) + b_att[0, 0]
    a1 = jax.nn.sigmoid(logits)
    return jnp.tanh(u0) * a1 + x * (1.0 - a1)


def gated_rgcn_reference_mixed(adj_cnt_bf16, inv_deg, x, w_rel_bf16,
                               w_root_bf16, bias, w_att_u_row, w_att_x_row,
                               b_att):
    """Mixed-precision reference mirroring the kernel exactly (tight check)."""
    bf16, f32 = jnp.bfloat16, jnp.float32
    RN, N = adj_cnt_bf16.shape
    R = RN // N
    x_bf = x.astype(bf16)
    agg = jnp.dot(adj_cnt_bf16, x_bf, preferred_element_type=f32) * inv_deg
    u0 = jnp.dot(x_bf, w_root_bf16, preferred_element_type=f32) + bias
    for r in range(R):
        u0 = u0 + jnp.dot(agg[r * N:(r + 1) * N].astype(bf16),
                          w_rel_bf16[r], preferred_element_type=f32)
    logits = jnp.sum(u0 * w_att_u_row + x * w_att_x_row,
                     axis=-1, keepdims=True) + b_att[0, 0]
    a1 = jax.nn.sigmoid(logits)
    return jnp.tanh(u0) * a1 + x * (1.0 - a1)


if __name__ == "__main__":
    key = jax.random.PRNGKey(0)
    N = 64          # number of nodes
    C = 32          # out_channels == in_channels of node features
    R = 3           # num_relations
    E = 128         # number of edges

    (k_x, k_src, k_dst, k_type, k_wrel, k_wroot, k_b, k_att, k_batt) = (
        jax.random.split(key, 9))

    node_features = jax.random.normal(k_x, (N, C), jnp.float32)
    edge_index = jnp.stack([
        jax.random.randint(k_src, (E,), 0, N),
        jax.random.randint(k_dst, (E,), 0, N),
    ], axis=0)                                           # (2, E)
    edge_type = jax.random.randint(k_type, (E,), 0, R)   # (E,)

    # Deterministic parameter init (glorot-style bounds).
    def glorot(k, shape, fan_in, fan_out, gain=1.0):
        bound = gain * (6.0 / (fan_in + fan_out)) ** 0.5
        return jax.random.uniform(k, shape, jnp.float32, -bound, bound)

    w_rel = glorot(k_wrel, (R, C, C), C, C)              # RGCNConv.weight
    w_root = glorot(k_wroot, (C, C), C, C)               # RGCNConv.root
    bias = jnp.zeros((1, C), jnp.float32)                # RGCNConv.bias
    # attention_layer: Linear(2C -> 1), xavier_uniform with sigmoid gain (=1)
    w_att = glorot(k_att, (1, 2 * C), 2 * C, 1, gain=1.0)
    w_att_u_row = w_att[:, :C]                           # (1, C) — applies to u_0
    w_att_x_row = w_att[:, C:]                           # (1, C) — applies to x
    b_att = jnp.zeros((1, 1), jnp.float32)

    # Build count adjacency + exact 1/deg factors; ship the big operand bf16.
    cnt, inv_deg_r = build_relation_adjacency_counts(edge_index, edge_type, N, R)
    adj_cnt_bf16 = cnt.reshape(R * N, N).astype(jnp.bfloat16)   # counts: exact in bf16
    inv_deg = inv_deg_r.reshape(R * N, 1)                        # f32 post-scale
    w_rel_bf16 = w_rel.astype(jnp.bfloat16)
    w_root_bf16 = w_root.astype(jnp.bfloat16)

    out = gated_rgcn_pallas(adj_cnt_bf16, inv_deg, node_features, w_rel_bf16,
                            w_root_bf16, bias, w_att_u_row, w_att_x_row, b_att)
    out = jax.block_until_ready(out)

    ref_mixed = gated_rgcn_reference_mixed(adj_cnt_bf16, inv_deg, node_features,
                                           w_rel_bf16, w_root_bf16, bias,
                                           w_att_u_row, w_att_x_row, b_att)
    adj_norm_f32 = cnt * inv_deg_r
    ref_f32 = gated_rgcn_reference_f32(adj_norm_f32, node_features, w_rel,
                                       w_root, bias, w_att_u_row, w_att_x_row,
                                       b_att)

    assert out.shape == (N, C)
    # Tight check vs. a reference doing the identical bf16-operand /
    # f32-accumulate math, and a semantic check vs. pure f32 (now 5e-2 instead
    # of the previous 1e-1 thanks to exact count adjacency + f32 mean scale).
    assert jnp.allclose(out, ref_mixed, atol=1e-2, rtol=1e-2)
    assert jnp.allclose(out, ref_f32, atol=5e-2, rtol=5e-2)

    print("KERNEL_OK")
</pallas_src>

<mosaic_0001>
module attributes {stable_mosaic.version = 11 : i64} {
  func.func @_gated_rgcn_kernel(%arg0: i32, %arg1: memref<192x64xbf16, #tpu.memory_space<vmem>>, %arg2: memref<192x1xf32, #tpu.memory_space<vmem>>, %arg3: memref<64x32xf32, #tpu.memory_space<vmem>>, %arg4: memref<3x32x32xbf16, #tpu.memory_space<vmem>>, %arg5: memref<32x32xbf16, #tpu.memory_space<vmem>>, %arg6: memref<1x32xf32, #tpu.memory_space<vmem>>, %arg7: memref<1x32xf32, #tpu.memory_space<vmem>>, %arg8: memref<1x32xf32, #tpu.memory_space<vmem>>, %arg9: memref<1x1xf32, #tpu.memory_space<smem>>, %arg10: memref<64x32xf32, #tpu.memory_space<vmem>>) attributes {dimension_semantics = [#tpu.dimension_semantics<parallel>], iteration_bounds = array<i64: 1>, scalar_prefetch = 0 : i64, scratch_operands = 0 : i64, tpu.core_type = #tpu.core_type<tc>, window_params = [{pipeline_mode = #tpu.pipeline_mode<synchronous>, transform_indices = @transform_0, window_bounds = array<i64: 192, 64>}, {pipeline_mode = #tpu.pipeline_mode<synchronous>, transform_indices = @transform_1, window_bounds = array<i64: 192, 1>}, {pipeline_mode = #tpu.pipeline_mode<synchronous>, transform_indices = @transform_2, window_bounds = array<i64: 64, 32>}, {pipeline_mode = #tpu.pipeline_mode<synchronous>, transform_indices = @transform_3, window_bounds = array<i64: 3, 32, 32>}, {pipeline_mode = #tpu.pipeline_mode<synchronous>, transform_indices = @transform_4, window_bounds = array<i64: 32, 32>}, {pipeline_mode = #tpu.pipeline_mode<synchronous>, transform_indices = @transform_5, window_bounds = array<i64: 1, 32>}, {pipeline_mode = #tpu.pipeline_mode<synchronous>, transform_indices = @transform_6, window_bounds = array<i64: 1, 32>}, {pipeline_mode = #tpu.pipeline_mode<synchronous>, transform_indices = @transform_7, window_bounds = array<i64: 1, 32>}, {transform_indices = @transform_8, window_bounds = array<i64: 1, 1>}, {pipeline_mode = #tpu.pipeline_mode<synchronous>, transform_indices = @transform_9, window_bounds = array<i64: 64, 32>}]} {
    %c0 = arith.constant 0 : index
    %c0_0 = arith.constant 0 : index
    %0 = vector.load %arg3[%c0, %c0_0] : memref<64x32xf32, #tpu.memory_space<vmem>>, vector<64x32xf32>
    %1 = arith.truncf %0 : vector<64x32xf32> to vector<64x32xbf16>
    %c0_1 = arith.constant 0 : index
    %c0_2 = arith.constant 0 : index
    %2 = vector.load %arg1[%c0_1, %c0_2] : memref<192x64xbf16, #tpu.memory_space<vmem>>, vector<192x64xbf16>
    %cst = arith.constant dense<0.000000e+00> : vector<192x32xf32>
    %3 = tpu.matmul %2, %1, %cst {dimension_numbers = #tpu.dot_dimension_numbers<[1], [0], [0], [1], [0, 0, 1, 1], [], []>} : vector<192x64xbf16>, vector<64x32xbf16>, vector<192x32xf32> -> vector<192x32xf32>
    %c0_3 = arith.constant 0 : index
    %c0_4 = arith.constant 0 : index
    %4 = vector.load %arg2[%c0_3, %c0_4] : memref<192x1xf32, #tpu.memory_space<vmem>>, vector<192x1xf32>
    %5 = vector.broadcast %4 : vector<192x1xf32> to vector<192x32xf32>
    %6 = arith.mulf %3, %5 : vector<192x32xf32>
    %c0_5 = arith.constant 0 : index
    %c0_6 = arith.constant 0 : index
    %7 = vector.load %arg5[%c0_5, %c0_6] : memref<32x32xbf16, #tpu.memory_space<vmem>>, vector<32x32xbf16>
    %cst_7 = arith.constant dense<0.000000e+00> : vector<64x32xf32>
    %8 = tpu.matmul %1, %7, %cst_7 {dimension_numbers = #tpu.dot_dimension_numbers<[1], [0], [0], [1], [0, 0, 1, 1], [], []>} : vector<64x32xbf16>, vector<32x32xbf16>, vector<64x32xf32> -> vector<64x32xf32>
    %c0_8 = arith.constant 0 : index
    %c0_9 = arith.constant 0 : index
    %9 = vector.load %arg6[%c0_8, %c0_9] : memref<1x32xf32, #tpu.memory_space<vmem>>, vector<1x32xf32>
    %10 = vector.broadcast %9 : vector<1x32xf32> to vector<64x32xf32>
    %11 = arith.addf %8, %10 : vector<64x32xf32>
    %12 = vector.extract_strided_slice %6 {offsets = [0, 0], sizes = [64, 32], strides = [1, 1]} : vector<192x32xf32> to vector<64x32xf32>
    %13 = arith.truncf %12 : vector<64x32xf32> to vector<64x32xbf16>
    %c0_10 = arith.constant 0 : index
    %c0_11 = arith.constant 0 : index
    %c0_12 = arith.constant 0 : index
    %14 = vector.load %arg4[%c0_10, %c0_11, %c0_12] : memref<3x32x32xbf16, #tpu.memory_space<vmem>>, vector<1x32x32xbf16>
    %15 = vector.shape_cast %14 : vector<1x32x32xbf16> to vector<32x32xbf16>
    %cst_13 = arith.constant dense<0.000000e+00> : vector<64x32xf32>
    %16 = tpu.matmul %13, %15, %cst_13 {dimension_numbers = #tpu.dot_dimension_numbers<[1], [0], [0], [1], [0, 0, 1, 1], [], []>} : vector<64x32xbf16>, vector<32x32xbf16>, vector<64x32xf32> -> vector<64x32xf32>
    %17 = arith.addf %11, %16 : vector<64x32xf32>
    %18 = vector.extract_strided_slice %6 {offsets = [64, 0], sizes = [64, 32], strides = [1, 1]} : vector<192x32xf32> to vector<64x32xf32>
    %19 = arith.truncf %18 : vector<64x32xf32> to vector<64x32xbf16>
    %c1 = arith.constant 1 : index
    %c0_14 = arith.constant 0 : index
    %c0_15 = arith.constant 0 : index
    %20 = vector.load %arg4[%c1, %c0_14, %c0_15] : memref<3x32x32xbf16, #tpu.memory_space<vmem>>, vector<1x32x32xbf16>
    %21 = vector.shape_cast %20 : vector<1x32x32xbf16> to vector<32x32xbf16>
    %cst_16 = arith.constant dense<0.000000e+00> : vector<64x32xf32>
    %22 = tpu.matmul %19, %21, %cst_16 {dimension_numbers = #tpu.dot_dimension_numbers<[1], [0], [0], [1], [0, 0, 1, 1], [], []>} : vector<64x32xbf16>, vector<32x32xbf16>, vector<64x32xf32> -> vector<64x32xf32>
    %23 = arith.addf %17, %22 : vector<64x32xf32>
    %24 = vector.extract_strided_slice %6 {offsets = [128, 0], sizes = [64, 32], strides = [1, 1]} : vector<192x32xf32> to vector<64x32xf32>
    %25 = arith.truncf %24 : vector<64x32xf32> to vector<64x32xbf16>
    %c2 = arith.constant 2 : index
    %c0_17 = arith.constant 0 : index
    %c0_18 = arith.constant 0 : index
    %26 = vector.load %arg4[%c2, %c0_17, %c0_18] : memref<3x32x32xbf16, #tpu.memory_space<vmem>>, vector<1x32x32xbf16>
    %27 = vector.shape_cast %26 : vector<1x32x32xbf16> to vector<32x32xbf16>
    %cst_19 = arith.constant dense<0.000000e+00> : vector<64x32xf32>
    %28 = tpu.matmul %25, %27, %cst_19 {dimension_numbers = #tpu.dot_dimension_numbers<[1], [0], [0], [1], [0, 0, 1, 1], [], []>} : vector<64x32xbf16>, vector<32x32xbf16>, vector<64x32xf32> -> vector<64x32xf32>
    %29 = arith.addf %23, %28 : vector<64x32xf32>
    %c0_20 = arith.constant 0 : index
    %c0_21 = arith.constant 0 : index
    %30 = vector.load %arg7[%c0_20, %c0_21] : memref<1x32xf32, #tpu.memory_space<vmem>>, vector<1x32xf32>
    %31 = vector.broadcast %30 : vector<1x32xf32> to vector<64x32xf32>
    %32 = arith.mulf %29, %31 : vector<64x32xf32>
    %c0_22 = arith.constant 0 : index
    %c0_23 = arith.constant 0 : index
    %33 = vector.load %arg8[%c0_22, %c0_23] : memref<1x32xf32, #tpu.memory_space<vmem>>, vector<1x32xf32>
    %34 = vector.broadcast %33 : vector<1x32xf32> to vector<64x32xf32>
    %35 = arith.mulf %0, %34 : vector<64x32xf32>
    %36 = arith.addf %32, %35 : vector<64x32xf32>
    %cst_24 = arith.constant dense<0.000000e+00> : vector<64xf32>
    %37 = vector.multi_reduction <add>, %36, %cst_24 [1] : vector<64x32xf32> to vector<64xf32>
    %38 = vector.shape_cast %37 : vector<64xf32> to vector<64x1xf32>
    %c0_25 = arith.constant 0 : index
    %c0_26 = arith.constant 0 : index
    %39 = memref.load %arg9[%c0_25, %c0_26] : memref<1x1xf32, #tpu.memory_space<smem>>
    %40 = vector.broadcast %39 : f32 to vector<64x1xf32>
    %41 = arith.addf %38, %40 : vector<64x1xf32>
    %42 = arith.negf %41 : vector<64x1xf32>
    %43 = math.exp %42 : vector<64x1xf32>
    %cst_27 = arith.constant 1.000000e+00 : f32
    %44 = vector.broadcast %cst_27 : f32 to vector<64x1xf32>
    %45 = arith.addf %44, %43 : vector<64x1xf32>
    %46 = arith.divf %44, %45 : vector<64x1xf32>
    %47 = math.tanh %29 : vector<64x32xf32>
    %48 = vector.broadcast %46 : vector<64x1xf32> to vector<64x32xf32>
    %49 = arith.mulf %47, %48 : vector<64x32xf32>
    %cst_28 = arith.constant 1.000000e+00 : f32
    %50 = vector.broadcast %cst_28 : f32 to vector<64x1xf32>
    %51 = arith.subf %50, %46 : vector<64x1xf32>
    %52 = vector.broadcast %51 : vector<64x1xf32> to vector<64x32xf32>
    %53 = arith.mulf %0, %52 : vector<64x32xf32>
    %54 = arith.addf %49, %53 : vector<64x32xf32>
    %c0_29 = arith.constant 0 : index
    %c0_30 = arith.constant 0 : index
    %55 = vector.load %arg10[%c0_29, %c0_30] : memref<64x32xf32, #tpu.memory_space<vmem>>, vector<64x32xf32>
    tpu.vector_store %arg10[%c0_29, %c0_30], %54 {strides = array<i32>} : memref<64x32xf32, #tpu.memory_space<vmem>>, vector<64x32xf32>,
    return
  }
  func.func @transform_0(%arg0: i32) -> (i32, i32) {
    %c0_i32 = arith.constant 0 : i32
    %c0_i32_0 = arith.constant 0 : i32
    %c0_i32_1 = arith.constant 0 : i32
    return %c0_i32, %c0_i32_0 : i32, i32
  }
  func.func @transform_1(%arg0: i32) -> (i32, i32) {
    %c0_i32 = arith.constant 0 : i32
    %c0_i32_0 = arith.constant 0 : i32
    %c0_i32_1 = arith.constant 0 : i32
    return %c0_i32, %c0_i32_0 : i32, i32
  }
  func.func @transform_2(%arg0: i32) -> (i32, i32) {
    %c0_i32 = arith.constant 0 : i32
    %c0_i32_0 = arith.constant 0 : i32
    %c0_i32_1 = arith.constant 0 : i32
    return %c0_i32, %c0_i32_0 : i32, i32
  }
  func.func @transform_3(%arg0: i32) -> (i32, i32, i32) {
    %c0_i32 = arith.constant 0 : i32
    %c0_i32_0 = arith.constant 0 : i32
    %c0_i32_1 = arith.constant 0 : i32
    %c0_i32_2 = arith.constant 0 : i32
    return %c0_i32, %c0_i32_0, %c0_i32_1 : i32, i32, i32
  }
  func.func @transform_4(%arg0: i32) -> (i32, i32) {
    %c0_i32 = arith.constant 0 : i32
    %c0_i32_0 = arith.constant 0 : i32
    %c0_i32_1 = arith.constant 0 : i32
    return %c0_i32, %c0_i32_0 : i32, i32
  }
  func.func @transform_5(%arg0: i32) -> (i32, i32) {
    %c0_i32 = arith.constant 0 : i32
    %c0_i32_0 = arith.constant 0 : i32
    %c0_i32_1 = arith.constant 0 : i32
    return %c0_i32, %c0_i32_0 : i32, i32
  }
  func.func @transform_6(%arg0: i32) -> (i32, i32) {
    %c0_i32 = arith.constant 0 : i32
    %c0_i32_0 = arith.constant 0 : i32
    %c0_i32_1 = arith.constant 0 : i32
    return %c0_i32, %c0_i32_0 : i32, i32
  }
  func.func @transform_7(%arg0: i32) -> (i32, i32) {
    %c0_i32 = arith.constant 0 : i32
    %c0_i32_0 = arith.constant 0 : i32
    %c0_i32_1 = arith.constant 0 : i32
    return %c0_i32, %c0_i32_0 : i32, i32
  }
  func.func @transform_8(%arg0: i32) -> (i32, i32) {
    %c0_i32 = arith.constant 0 : i32
    %c0_i32_0 = arith.constant 0 : i32
    %c0_i32_1 = arith.constant 0 : i32
    return %c0_i32, %c0_i32_0 : i32, i32
  }
  func.func @transform_9(%arg0: i32) -> (i32, i32) {
    %c0_i32 = arith.constant 0 : i32
    %c0_i32_0 = arith.constant 0 : i32
    %c0_i32_1 = arith.constant 0 : i32
    return %c0_i32, %c0_i32_0 : i32, i32
  }
}

</mosaic_0001>

<llo_original>
// kernel: gated_rgcn_pallas.1
$region0: #{gated_rgcn_pallas.1}
  #allocation0 [shape = 'u32[]', space=smem, size = 0x4, offset = 0x4, fixed_abs, tag = 'smem constant byte address 0x4 - core index']
  #allocation1 [shape = 'u32[144,128]{1,0:T(1,128)}', space=vmem, size = 0x12000, scoped, tag = 'internal scratch']
  #allocation2 [shape = 'f32[1,1]{1,0:T(1,128)S(6)}', space=smem, size = 0x200, scoped, tag = 'scoped memory for gated_rgcn_pallas.1']
  %s0 = inlined_call_operand.vmem [shape: bf16[192,64], index: 0, kind: input, shape index: {}]
  %s1 = inlined_call_operand.vmem [shape: f32[192,1], index: 1, kind: input, shape index: {}]
  %s2 = inlined_call_operand.vmem [shape: f32[64,32], index: 2, kind: input, shape index: {}]
  %s3 = inlined_call_operand.vmem [shape: bf16[3,32,32], index: 3, kind: input, shape index: {}]
  %s4 = inlined_call_operand.vmem [shape: bf16[32,32], index: 4, kind: input, shape index: {}]
  %s5 = inlined_call_operand.vmem [shape: f32[1,32], index: 5, kind: input, shape index: {}]
  %s6 = inlined_call_operand.vmem [shape: f32[1,32], index: 6, kind: input, shape index: {}]
  %s7 = inlined_call_operand.vmem [shape: f32[1,32], index: 7, kind: input, shape index: {}]
  %s8 = inlined_call_operand.<no memory space> [shape: f32[1,1], index: 8, kind: input, shape index: {}]
  %s9 = inlined_call_operand.vmem [shape: f32[64,32], index: 9, kind: output, shape index: {}]
  %s10 = sld [smem:[#allocation0]]
  $region46: #{gated_rgcn_pallas.1} parent=0
    _
  %s12 = ssub.s32 1, %s10
  %s13 = scalar_select 0, %s12, %s10
  %14 = sst [smem:[#allocation2]] %s8
  // Predicated region
  $region2: #{gated_rgcn_pallas.1} parent=0 // pred_check
    _
  $region3: #{gated_rgcn_pallas.1} parent=0 // pred_check_branch
    %16 = sbr.rel (0) target = $region5
  $region4: #{gated_rgcn_pallas.1} parent=0 // pred_region
    _
  $region5: #{gated_rgcn_pallas.1} parent=0 // pred_fallthru
    _
  // Predicated region
  $region6: #{gated_rgcn_pallas.1} parent=0 // pred_check
    _
  $region7: #{gated_rgcn_pallas.1} parent=0 // pred_check_branch
    %18 = sbr.rel (0) target = $region9
  $region8: #{gated_rgcn_pallas.1} parent=0 // pred_region
    _
  $region9: #{gated_rgcn_pallas.1} parent=0 // pred_fallthru
    _
  // Predicated region
  $region10: #{gated_rgcn_pallas.1} parent=0 // pred_check
    _
  $region11: #{gated_rgcn_pallas.1} parent=0 // pred_check_branch
    %20 = sbr.rel (0) target = $region13
  $region12: #{gated_rgcn_pallas.1} parent=0 // pred_region
    _
  $region13: #{gated_rgcn_pallas.1} parent=0 // pred_fallthru
    _
  // Predicated region
  $region14: #{gated_rgcn_pallas.1} parent=0 // pred_check
    _
  $region15: #{gated_rgcn_pallas.1} parent=0 // pred_check_branch
    %22 = sbr.rel (0) target = $region17
  $region16: #{gated_rgcn_pallas.1} parent=0 // pred_region
    _
  $region17: #{gated_rgcn_pallas.1} parent=0 // pred_fallthru
    _
  // Predicated region
  $region18: #{gated_rgcn_pallas.1} parent=0 // pred_check
    _
  $region19: #{gated_rgcn_pallas.1} parent=0 // pred_check_branch
    %24 = sbr.rel (0) target = $region21
  $region20: #{gated_rgcn_pallas.1} parent=0 // pred_region
    _
  $region21: #{gated_rgcn_pallas.1} parent=0 // pred_fallthru
    _
  // Predicated region
  $region22: #{gated_rgcn_pallas.1} parent=0 // pred_check
    _
  $region23: #{gated_rgcn_pallas.1} parent=0 // pred_check_branch
    %26 = sbr.rel (0) target = $region25
  $region24: #{gated_rgcn_pallas.1} parent=0 // pred_region
    _
  $region25: #{gated_rgcn_pallas.1} parent=0 // pred_fallthru
    _
  // Predicated region
  $region26: #{gated_rgcn_pallas.1} parent=0 // pred_check
    _
  $region27: #{gated_rgcn_pallas.1} parent=0 // pred_check_branch
    %28 = sbr.rel (0) target = $region29
  $region28: #{gated_rgcn_pallas.1} parent=0 // pred_region
    _
  $region29: #{gated_rgcn_pallas.1} parent=0 // pred_fallthru
    _
  // Predicated region
  $region30: #{gated_rgcn_pallas.1} parent=0 // pred_check
    _
  $region31: #{gated_rgcn_pallas.1} parent=0 // pred_check_branch
    %30 = sbr.rel (0) target = $region33
  $region32: #{gated_rgcn_pallas.1} parent=0 // pred_region
    _
  $region33: #{gated_rgcn_pallas.1} parent=0 // pred_fallthru
    _
  // Predicated region
  $region34: #{gated_rgcn_pallas.1} parent=0 // pred_check
    _
  $region35: #{gated_rgcn_pallas.1} parent=0 // pred_check_branch
    %32 = sbr.rel (0) target = $region37
  $region36: #{gated_rgcn_pallas.1} parent=0 // pred_region
    _
  $region37: #{gated_rgcn_pallas.1} parent=0 // pred_fallthru
    _
  %v34 = vld [vmem:[%s2] sm:$0xff]
  %v35 = vld [vmem:[%s2 + $0x8] sm:$0xff]
  %v36 = vld [vmem:[%s2 + $0x10] sm:$0xff]
  %v37 = vld [vmem:[%s2 + $0x18] sm:$0xff]
  %v38 = vld [vmem:[%s2 + $0x20] sm:$0xff]
  %v39 = vld [vmem:[%s2 + $0x28] sm:$0xff]
  %v40 = vld [vmem:[%s2 + $0x30] sm:$0xff]
  %v41 = vld [vmem:[%s2 + $0x38] sm:$0xff]
  %v42 = vpack.c.bf16 %v35, %v34
  %v43 = vpack.c.bf16 %v37, %v36
  %v44 = vpack.c.bf16 %v39, %v38
  %v45 = vpack.c.bf16 %v41, %v40
  %v46 = vld [vmem:[%s0] sm:$0xf]
  %v47 = vld [vmem:[%s0 + $0x4] sm:$0xf]
  %v48 = vld [vmem:[%s0 + $0x8] sm:$0xf]
  %v49 = vld [vmem:[%s0 + $0xc] sm:$0xf]
  %v50 = vld [vmem:[%s0 + $0x10] sm:$0xf]
  %v51 = vld [vmem:[%s0 + $0x14] sm:$0xf]
  %v52 = vld [vmem:[%s0 + $0x18] sm:$0xf]
  %v53 = vld [vmem:[%s0 + $0x1c] sm:$0xf]
  %v54 = vld [vmem:[%s0 + $0x20] sm:$0xf]
  %v55 = vld [vmem:[%s0 + $0x24] sm:$0xf]
  %v56 = vld [vmem:[%s0 + $0x28] sm:$0xf]
  %v57 = vld [vmem:[%s0 + $0x2c] sm:$0xf]
  %v58 = vld [vmem:[%s0 + $0x30] sm:$0xf]
  %v59 = vld [vmem:[%s0 + $0x34] sm:$0xf]
  %v60 = vld [vmem:[%s0 + $0x38] sm:$0xf]
  %v61 = vld [vmem:[%s0 + $0x3c] sm:$0xf]
  %v62 = vld [vmem:[%s0 + $0x40] sm:$0xf]
  %v63 = vld [vmem:[%s0 + $0x44] sm:$0xf]
  %v64 = vld [vmem:[%s0 + $0x48] sm:$0xf]
  %v65 = vld [vmem:[%s0 + $0x4c] sm:$0xf]
  %v66 = vld [vmem:[%s0 + $0x50] sm:$0xf]
  %v67 = vld [vmem:[%s0 + $0x54] sm:$0xf]
  %v68 = vld [vmem:[%s0 + $0x58] sm:$0xf]
  %v69 = vld [vmem:[%s0 + $0x5c] sm:$0xf]
  %v94 = vunpack.c.l.b16 %v46
  %v95 = vunpack.c.l.b16 %v47
  %v96 = vunpack.c.l.b16 %v48
  %v97 = vunpack.c.l.b16 %v49
  %v98 = vunpack.c.l.b16 %v50
  %v99 = vunpack.c.l.b16 %v51
  %v100 = vunpack.c.l.b16 %v52
  %v101 = vunpack.c.l.b16 %v53
  %v102 = vunpack.c.l.b16 %v54
  %v103 = vunpack.c.l.b16 %v55
  %v104 = vunpack.c.l.b16 %v56
  %v105 = vunpack.c.l.b16 %v57
  %v106 = vunpack.c.l.b16 %v58
  %v107 = vunpack.c.l.b16 %v59
  %v108 = vunpack.c.l.b16 %v60
  %v109 = vunpack.c.l.b16 %v61
  %v110 = vunpack.c.l.b16 %v62
  %v111 = vunpack.c.l.b16 %v63
  %v112 = vunpack.c.l.b16 %v64
  %v113 = vunpack.c.l.b16 %v65
  %v114 = vunpack.c.l.b16 %v66
  %v115 = vunpack.c.l.b16 %v67
  %v116 = vunpack.c.l.b16 %v68
  %v117 = vunpack.c.l.b16 %v69
  %v118 = vpack.c.b16 %v95, %v94
  %v119 = vpack.c.b16 %v97, %v96
  %v120 = vpack.c.b16 %v99, %v98
  %v121 = vpack.c.b16 %v101, %v100
  %v122 = vpack.c.b16 %v103, %v102
  %v123 = vpack.c.b16 %v105, %v104
  %v124 = vpack.c.b16 %v107, %v106
  %v125 = vpack.c.b16 %v109, %v108
  %v126 = vpack.c.b16 %v111, %v110
  %v127 = vpack.c.b16 %v113, %v112
  %v128 = vpack.c.b16 %v115, %v114
  %v129 = vpack.c.b16 %v117, %v116
  %vm130 = vcmask 523264
  %v132 = vsel %vm130, %v118, 0
  %v135 = vsel %vm130, %v119, 0
  %v138 = vsel %vm130, %v120, 0
  %v141 = vsel %vm130, %v121, 0
  %v144 = vsel %vm130, %v122, 0
  %v147 = vsel %vm130, %v123, 0
  %v150 = vsel %vm130, %v124, 0
  %v153 = vsel %vm130, %v125, 0
  %v156 = vsel %vm130, %v126, 0
  %v159 = vsel %vm130, %v127, 0
  %v162 = vsel %vm130, %v128, 0
  %v165 = vsel %vm130, %v129, 0
  %167 = vmatprep.subr.bf16.mxu0 0
  %168 = vmatpush1.bf16.msra.mxu0 %v42
  %169 = vmatprep.subr.bf16.mxu0 0
  %170 = vmatpush1.bf16.msra.mxu0 %v43
  %171 = vmatprep.subr.bf16.mxu0 0
  %172 = vmatpush1.bf16.msra.mxu0 %v44
  %173 = vmatprep.subr.bf16.mxu0 0
  %174 = vmatpush1.bf16.msra.mxu0 %v45
  %175 = vmatprep.subr.bf16.mxu0 0
  %176 = vmatpush1.bf16.msra.mxu0 0
  %177 = vmatprep.subr.bf16.mxu0 0
  %178 = vmatpush1.bf16.msra.mxu0 0
  %179 = vmatprep.subr.bf16.mxu0 0
  %180 = vmatpush1.bf16.msra.mxu0 0
  %181 = vmatprep.subr.bf16.mxu0 0
  %182 = vmatpush1.bf16.msra.mxu0 0
  %183 = vmatprep.subr.bf16.mxu0 0
  %184 = vmatpush1.bf16.msra.mxu0 0
  %185 = vmatprep.subr.bf16.mxu0 0
  %186 = vmatpush1.bf16.msra.mxu0 0
  %187 = vmatprep.subr.bf16.mxu0 0
  %188 = vmatpush1.bf16.msra.mxu0 0
  %189 = vmatprep.subr.bf16.mxu0 0
  %190 = vmatpush1.bf16.msra.mxu0 0
  %191 = vmatprep.subr.bf16.mxu0 0
  %192 = vmatpush1.bf16.msra.mxu0 0
  %193 = vmatprep.subr.bf16.mxu0 0
  %194 = vmatpush1.bf16.msra.mxu0 0
  %195 = vmatprep.subr.bf16.mxu0 0
  %196 = vmatpush1.bf16.msra.mxu0 0
  %197 = vmatprep.subr.bf16.mxu0 0
  %198 = vmatpush1.bf16.msra.mxu0 0
  %199 = vmatprep.mubr.bf16.mxu0 0
  %200 = vmatmul.mubr.bf16.gmra.mrb[0].mxu0 %v132
  %v201 = vpop.f32.mrb[0].mxu0
  %v202 = vadd.f32 0.0, %v201
  %v203 = vpop.f32.mrb[0].mxu0
  %v204 = vpop.f32.mrb[0].mxu0
  %v205 = vadd.f32 0.0, %v204
  %v206 = vpop.f32.mrb[0].mxu0
  %207 = vmatprep.mubr.bf16.mxu0 0
  %208 = vmatmul.mubr.bf16.gmra.mrb[0].mxu0 %v135
  %v209 = vpop.f32.mrb[0].mxu0
  %v210 = vadd.f32 0.0, %v209
  %v211 = vpop.f32.mrb[0].mxu0
  %v212 = vpop.f32.mrb[0].mxu0
  %v213 = vadd.f32 0.0, %v212
  %v214 = vpop.f32.mrb[0].mxu0
  %215 = vmatprep.mubr.bf16.mxu0 0
  %216 = vmatmul.mubr.bf16.gmra.mrb[0].mxu0 %v138
  %v217 = vpop.f32.mrb[0].mxu0
  %v218 = vadd.f32 0.0, %v217
  %v219 = vpop.f32.mrb[0].mxu0
  %v220 = vpop.f32.mrb[0].mxu0
  %v221 = vadd.f32 0.0, %v220
  %v222 = vpop.f32.mrb[0].mxu0
  %223 = vmatprep.mubr.bf16.mxu0 0
  %224 = vmatmul.mubr.bf16.gmra.mrb[0].mxu0 %v141
  %v225 = vpop.f32.mrb[0].mxu0
  %v226 = vadd.f32 0.0, %v225
  %v227 = vpop.f32.mrb[0].mxu0
  %v228 = vpop.f32.mrb[0].mxu0
  %v229 = vadd.f32 0.0, %v228
  %v230 = vpop.f32.mrb[0].mxu0
  %231 = vmatprep.mubr.bf16.mxu0 0
  %232 = vmatmul.mubr.bf16.gmra.mrb[0].mxu0 %v144
  %v233 = vpop.f32.mrb[0].mxu0
  %v234 = vadd.f32 0.0, %v233
  %v235 = vpop.f32.mrb[0].mxu0
  %v236 = vpop.f32.mrb[0].mxu0
  %v237 = vadd.f32 0.0, %v236
  %v238 = vpop.f32.mrb[0].mxu0
  %239 = vmatprep.mubr.bf16.mxu0 0
  %240 = vmatmul.mubr.bf16.gmra.mrb[0].mxu0 %v147
  %v241 = vpop.f32.mrb[0].mxu0
  %v242 = vadd.f32 0.0, %v241
  %v243 = vpop.f32.mrb[0].mxu0
  %v244 = vpop.f32.mrb[0].mxu0
  %v245 = vadd.f32 0.0, %v244
  %v246 = vpop.f32.mrb[0].mxu0
  %247 = vmatprep.mubr.bf16.mxu0 0
  %248 = vmatmul.mubr.bf16.gmra.mrb[0].mxu0 %v150
  %v249 = vpop.f32.mrb[0].mxu0
  %v250 = vadd.f32 0.0, %v249
  %v251 = vpop.f32.mrb[0].mxu0
  %v252 = vpop.f32.mrb[0].mxu0
  %v253 = vadd.f32 0.0, %v252
  %v254 = vpop.f32.mrb[0].mxu0
  %255 = vmatprep.mubr.bf16.mxu0 0
  %256 = vmatmul.mubr.bf16.gmra.mrb[0].mxu0 %v153
  %v257 = vpop.f32.mrb[0].mxu0
  %v258 = vadd.f32 0.0, %v257
  %v259 = vpop.f32.mrb[0].mxu0
  %v260 = vpop.f32.mrb[0].mxu0
  %v261 = vadd.f32 0.0, %v260
  %v262 = vpop.f32.mrb[0].mxu0
  %263 = vmatprep.mubr.bf16.mxu0 0
  %264 = vmatmul.mubr.bf16.gmra.mrb[0].mxu0 %v156
  %v265 = vpop.f32.mrb[0].mxu0
  %v266 = vadd.f32 0.0, %v265
  %v267 = vpop.f32.mrb[0].mxu0
  %v268 = vpop.f32.mrb[0].mxu0
  %v269 = vadd.f32 0.0, %v268
  %v270 = vpop.f32.mrb[0].mxu0
  %271 = vmatprep.mubr.bf16.mxu0 0
  %272 = vmatmul.mubr.bf16.gmra.mrb[0].mxu0 %v159
  %v273 = vpop.f32.mrb[0].mxu0
  %v274 = vadd.f32 0.0, %v273
  %v275 = vpop.f32.mrb[0].mxu0
  %v276 = vpop.f32.mrb[0].mxu0
  %v277 = vadd.f32 0.0, %v276
  %v278 = vpop.f32.mrb[0].mxu0
  %279 = vmatprep.mubr.bf16.mxu0 0
  %280 = vmatmul.mubr.bf16.gmra.mrb[0].mxu0 %v162
  %v281 = vpop.f32.mrb[0].mxu0
  %v282 = vadd.f32 0.0, %v281
  %v283 = vpop.f32.mrb[0].mxu0
  %v284 = vpop.f32.mrb[0].mxu0
  %v285 = vadd.f32 0.0, %v284
  %v286 = vpop.f32.mrb[0].mxu0
  %287 = vmatprep.mubr.bf16.mxu0 0
  %288 = vmatmul.mubr.bf16.gmra.mrb[0].mxu0 %v165
  %v289 = vpop.f32.mrb[0].mxu0
  %v290 = vadd.f32 0.0, %v289
  %v291 = vpop.f32.mrb[0].mxu0
  %v292 = vpop.f32.mrb[0].mxu0
  %v293 = vadd.f32 0.0, %v292
  %v294 = vpop.f32.mrb[0].mxu0
  %295 = vdwg.mxu0
  %v296 = vld [vmem:[%s1] sm:$0xff]
  %v297 = vld [vmem:[%s1 + $0x8] sm:$0xff]
  %v298 = vld [vmem:[%s1 + $0x10] sm:$0xff]
  %v299 = vld [vmem:[%s1 + $0x18] sm:$0xff]
  %v300 = vld [vmem:[%s1 + $0x20] sm:$0xff]
  %v301 = vld [vmem:[%s1 + $0x28] sm:$0xff]
  %v302 = vld [vmem:[%s1 + $0x30] sm:$0xff]
  %v303 = vld [vmem:[%s1 + $0x38] sm:$0xff]
  %v304 = vld [vmem:[%s1 + $0x40] sm:$0xff]
  %v305 = vld [vmem:[%s1 + $0x48] sm:$0xff]
  %v306 = vld [vmem:[%s1 + $0x50] sm:$0xff]
  %v307 = vld [vmem:[%s1 + $0x58] sm:$0xff]
  %v308 = vld [vmem:[%s1 + $0x60] sm:$0xff]
  %v309 = vld [vmem:[%s1 + $0x68] sm:$0xff]
  %v310 = vld [vmem:[%s1 + $0x70] sm:$0xff]
  %v311 = vld [vmem:[%s1 + $0x78] sm:$0xff]
  %v312 = vld [vmem:[%s1 + $0x80] sm:$0xff]
  %v313 = vld [vmem:[%s1 + $0x88] sm:$0xff]
  %v314 = vld [vmem:[%s1 + $0x90] sm:$0xff]
  %v315 = vld [vmem:[%s1 + $0x98] sm:$0xff]
  %v316 = vld [vmem:[%s1 + $0xa0] sm:$0xff]
  %v317 = vld [vmem:[%s1 + $0xa8] sm:$0xff]
  %v318 = vld [vmem:[%s1 + $0xb0] sm:$0xff]
  %v319 = vld [vmem:[%s1 + $0xb8] sm:$0xff]
  %321 = vset.pattern.permute.xlu0 0
  %322 = vperm.xlu0 %321, %v296
  %v323 = vpop.permute.xlu0 %322
  %326 = vset.pattern.permute.xlu0 0
  %327 = vperm.xlu0 %326, %v297
  %v328 = vpop.permute.xlu0 %327
  %331 = vset.pattern.permute.xlu0 0
  %332 = vperm.xlu0 %331, %v298
  %v333 = vpop.permute.xlu0 %332
  %336 = vset.pattern.permute.xlu0 0
  %337 = vperm.xlu0 %336, %v299
  %v338 = vpop.permute.xlu0 %337
  %341 = vset.pattern.permute.xlu0 0
  %342 = vperm.xlu0 %341, %v300
  %v343 = vpop.permute.xlu0 %342
  %346 = vset.pattern.permute.xlu0 0
  %347 = vperm.xlu0 %346, %v301
  %v348 = vpop.permute.xlu0 %347
  %351 = vset.pattern.permute.xlu0 0
  %352 = vperm.xlu0 %351, %v302
  %v353 = vpop.permute.xlu0 %352
  %356 = vset.pattern.permute.xlu0 0
  %357 = vperm.xlu0 %356, %v303
  %v358 = vpop.permute.xlu0 %357
  %361 = vset.pattern.permute.xlu0 0
  %362 = vperm.xlu0 %361, %v304
  %v363 = vpop.permute.xlu0 %362
  %366 = vset.pattern.permute.xlu0 0
  %367 = vperm.xlu0 %366, %v305
  %v368 = vpop.permute.xlu0 %367
  %371 = vset.pattern.permute.xlu0 0
  %372 = vperm.xlu0 %371, %v306
  %v373 = vpop.permute.xlu0 %372
  %376 = vset.pattern.permute.xlu0 0
  %377 = vperm.xlu0 %376, %v307
  %v378 = vpop.permute.xlu0 %377
  %381 = vset.pattern.permute.xlu0 0
  %382 = vperm.xlu0 %381, %v308
  %v383 = vpop.permute.xlu0 %382
  %386 = vset.pattern.permute.xlu0 0
  %387 = vperm.xlu0 %386, %v309
  %v388 = vpop.permute.xlu0 %387
  %391 = vset.pattern.permute.xlu0 0
  %392 = vperm.xlu0 %391, %v310
  %v393 = vpop.permute.xlu0 %392
  %396 = vset.pattern.permute.xlu0 0
  %397 = vperm.xlu0 %396, %v311
  %v398 = vpop.permute.xlu0 %397
  %401 = vset.pattern.permute.xlu0 0
  %402 = vperm.xlu0 %401, %v312
  %v403 = vpop.permute.xlu0 %402
  %406 = vset.pattern.permute.xlu0 0
  %407 = vperm.xlu0 %406, %v313
  %v408 = vpop.permute.xlu0 %407
  %411 = vset.pattern.permute.xlu0 0
  %412 = vperm.xlu0 %411, %v314
  %v413 = vpop.permute.xlu0 %412
  %416 = vset.pattern.permute.xlu0 0
  %417 = vperm.xlu0 %416, %v315
  %v418 = vpop.permute.xlu0 %417
  %421 = vset.pattern.permute.xlu0 0
  %422 = vperm.xlu0 %421, %v316
  %v423 = vpop.permute.xlu0 %422
  %426 = vset.pattern.permute.xlu0 0
  %427 = vperm.xlu0 %426, %v317
  %v428 = vpop.permute.xlu0 %427
  %431 = vset.pattern.permute.xlu0 0
  %432 = vperm.xlu0 %431, %v318
  %v433 = vpop.permute.xlu0 %432
  %436 = vset.pattern.permute.xlu0 0
  %437 = vperm.xlu0 %436, %v319
  %v438 = vpop.permute.xlu0 %437
  %v440 = vmul.f32 %v202, %v323
  %v441 = vmul.f32 %v205, %v328
  %v442 = vmul.f32 %v210, %v333
  %v443 = vmul.f32 %v213, %v338
  %v444 = vmul.f32 %v218, %v343
  %v445 = vmul.f32 %v221, %v348
  %v446 = vmul.f32 %v226, %v353
  %v447 = vmul.f32 %v229, %v358
  %v448 = vmul.f32 %v234, %v363
  %v449 = vmul.f32 %v237, %v368
  %v450 = vmul.f32 %v242, %v373
  %v451 = vmul.f32 %v245, %v378
  %v452 = vmul.f32 %v250, %v383
  %v453 = vmul.f32 %v253, %v388
  %v454 = vmul.f32 %v258, %v393
  %v455 = vmul.f32 %v261, %v398
  %v456 = vmul.f32 %v266, %v403
  %v457 = vmul.f32 %v269, %v408
  %v458 = vmul.f32 %v274, %v413
  %v459 = vmul.f32 %v277, %v418
  %v460 = vmul.f32 %v282, %v423
  %v461 = vmul.f32 %v285, %v428
  %v462 = vmul.f32 %v290, %v433
  %v463 = vmul.f32 %v293, %v438
  %v464 = vld [vmem:[%s4] sm:$0xf]
  %v465 = vld [vmem:[%s4 + $0x4] sm:$0xf]
  %v466 = vld [vmem:[%s4 + $0x8] sm:$0xf]
  %v467 = vld [vmem:[%s4 + $0xc] sm:$0xf]
  %v468 = vld [vmem:[%s5] sm:$0x1]
  %v470 = vlaneseq
  %v471 = vshrl.u32 %v470, 7
  %v472 = vsub.s32 0, %v471
  %v473 = vrot.slane %v468, %v472
  %v479 = vunpack.c.l.b16 %v464
  %v480 = vunpack.c.l.b16 %v465
  %v481 = vunpack.c.l.b16 %v466
  %v482 = vunpack.c.l.b16 %v467
  %v483 = vpack.c.b16 %v480, %v479
  %v484 = vpack.c.b16 %v482, %v481
  %vm487 = vcmask 261120
  %v489 = vsel %vm487, %v42, 0
  %v492 = vsel %vm487, %v43, 0
  %v495 = vsel %vm487, %v44, 0
  %v498 = vsel %vm487, %v45, 0
  %500 = vmatprep.subr.bf16.mxu0 0
  %501 = vmatpush1.bf16.msra.mxu0 %v483
  %502 = vmatprep.subr.bf16.mxu0 0
  %503 = vmatpush1.bf16.msra.mxu0 %v484
  %504 = vmatprep.subr.bf16.mxu0 0
  %505 = vmatpush1.bf16.msra.mxu0 0
  %506 = vmatprep.subr.bf16.mxu0 0
  %507 = vmatpush1.bf16.msra.mxu0 0
  %508 = vmatprep.subr.bf16.mxu0 0
  %509 = vmatpush1.bf16.msra.mxu0 0
  %510 = vmatprep.subr.bf16.mxu0 0
  %511 = vmatpush1.bf16.msra.mxu0 0
  %512 = vmatprep.subr.bf16.mxu0 0
  %513 = vmatpush1.bf16.msra.mxu0 0
  %514 = vmatprep.subr.bf16.mxu0 0
  %515 = vmatpush1.bf16.msra.mxu0 0
  %516 = vmatprep.subr.bf16.mxu0 0
  %517 = vmatpush1.bf16.msra.mxu0 0
  %518 = vmatprep.subr.bf16.mxu0 0
  %519 = vmatpush1.bf16.msra.mxu0 0
  %520 = vmatprep.subr.bf16.mxu0 0
  %521 = vmatpush1.bf16.msra.mxu0 0
  %522 = vmatprep.subr.bf16.mxu0 0
  %523 = vmatpush1.bf16.msra.mxu0 0
  %524 = vmatprep.subr.bf16.mxu0 0
  %525 = vmatpush1.bf16.msra.mxu0 0
  %526 = vmatprep.subr.bf16.mxu0 0
  %527 = vmatpush1.bf16.msra.mxu0 0
  %528 = vmatprep.subr.bf16.mxu0 0
  %529 = vmatpush1.bf16.msra.mxu0 0
  %530 = vmatprep.subr.bf16.mxu0 0
  %531 = vmatpush1.bf16.msra.mxu0 0
  %532 = vmatprep.mubr.bf16.mxu0 0
  %533 = vmatmul.mubr.bf16.gmra.mrb[0].mxu0 %v489
  %v534 = vpop.f32.mrb[0].mxu0
  %v535 = vadd.f32 %v473, %v534
  %v536 = vpop.f32.mrb[0].mxu0
  %v537 = vpop.f32.mrb[0].mxu0
  %v538 = vadd.f32 %v473, %v537
  %v539 = vpop.f32.mrb[0].mxu0
  %540 = vmatprep.mubr.bf16.mxu0 0
  %541 = vmatmul.mubr.bf16.gmra.mrb[0].mxu0 %v492
  %v542 = vpop.f32.mrb[0].mxu0
  %v543 = vadd.f32 %v473, %v542
  %v544 = vpop.f32.mrb[0].mxu0
  %v545 = vpop.f32.mrb[0].mxu0
  %v546 = vadd.f32 %v473, %v545
  %v547 = vpop.f32.mrb[0].mxu0
  %548 = vmatprep.mubr.bf16.mxu0 0
  %549 = vmatmul.mubr.bf16.gmra.mrb[0].mxu0 %v495
  %v550 = vpop.f32.mrb[0].mxu0
  %v551 = vadd.f32 %v473, %v550
  %v552 = vpop.f32.mrb[0].mxu0
  %v553 = vpop.f32.mrb[0].mxu0
  %v554 = vadd.f32 %v473, %v553
  %v555 = vpop.f32.mrb[0].mxu0
  %556 = vmatprep.mubr.bf16.mxu0 0
  %557 = vmatmul.mubr.bf16.gmra.mrb[0].mxu0 %v498
  %v558 = vpop.f32.mrb[0].mxu0
  %v559 = vadd.f32 %v473, %v558
  %v560 = vpop.f32.mrb[0].mxu0
  %v561 = vpop.f32.mrb[0].mxu0
  %v562 = vadd.f32 %v473, %v561
  %v563 = vpop.f32.mrb[0].mxu0
  %564 = vdwg.mxu0
  %v565 = vpack.c.bf16 %v441, %v440
  %v566 = vpack.c.bf16 %v443, %v442
  %v567 = vpack.c.bf16 %v445, %v444
  %v568 = vpack.c.bf16 %v447, %v446
  %v569 = vld [vmem:[%s3] sm:$0xf]
  %v570 = vld [vmem:[%s3 + $0x4] sm:$0xf]
  %v571 = vld [vmem:[%s3 + $0x8] sm:$0xf]
  %v572 = vld [vmem:[%s3 + $0xc] sm:$0xf]
  %v577 = vunpack.c.l.b16 %v569
  %v578 = vunpack.c.l.b16 %v570
  %v579 = vunpack.c.l.b16 %v571
  %v580 = vunpack.c.l.b16 %v572
  %v581 = vpack.c.b16 %v578, %v577
  %v582 = vpack.c.b16 %v580, %v579
  %v586 = vsel %vm487, %v565, 0
  %v589 = vsel %vm487, %v566, 0
  %v592 = vsel %vm487, %v567, 0
  %v595 = vsel %vm487, %v568, 0
  %597 = vmatprep.subr.bf16.mxu0 0
  %598 = vmatpush1.bf16.msra.mxu0 %v581
  %599 = vmatprep.subr.bf16.mxu0 0
  %600 = vmatpush1.bf16.msra.mxu0 %v582
  %601 = vmatprep.subr.bf16.mxu0 0
  %602 = vmatpush1.bf16.msra.mxu0 0
  %603 = vmatprep.subr.bf16.mxu0 0
  %604 = vmatpush1.bf16.msra.mxu0 0
  %605 = vmatprep.subr.bf16.mxu0 0
  %606 = vmatpush1.bf16.msra.mxu0 0
  %607 = vmatprep.subr.bf16.mxu0 0
  %608 = vmatpush1.bf16.msra.mxu0 0
  %609 = vmatprep.subr.bf16.mxu0 0
  %610 = vmatpush1.bf16.msra.mxu0 0
  %611 = vmatprep.subr.bf16.mxu0 0
  %612 = vmatpush1.bf16.msra.mxu0 0
  %613 = vmatprep.subr.bf16.mxu0 0
  %614 = vmatpush1.bf16.msra.mxu0 0
  %615 = vmatprep.subr.bf16.mxu0 0
  %616 = vmatpush1.bf16.msra.mxu0 0
  %617 = vmatprep.subr.bf16.mxu0 0
  %618 = vmatpush1.bf16.msra.mxu0 0
  %619 = vmatprep.subr.bf16.mxu0 0
  %620 = vmatpush1.bf16.msra.mxu0 0
  %621 = vmatprep.subr.bf16.mxu0 0
  %622 = vmatpush1.bf16.msra.mxu0 0
  %623 = vmatprep.subr.bf16.mxu0 0
  %624 = vmatpush1.bf16.msra.mxu0 0
  %625 = vmatprep.subr.bf16.mxu0 0
  %626 = vmatpush1.bf16.msra.mxu0 0
  %627 = vmatprep.subr.bf16.mxu0 0
  %628 = vmatpush1.bf16.msra.mxu0 0
  %629 = vmatprep.mubr.bf16.mxu0 0
  %630 = vmatmul.mubr.bf16.gmra.mrb[0].mxu0 %v586
  %v631 = vpop.f32.mrb[0].mxu0
  %v632 = vadd.f32 0.0, %v631
  %v633 = vpop.f32.mrb[0].mxu0
  %v634 = vpop.f32.mrb[0].mxu0
  %v635 = vadd.f32 0.0, %v634
  %v636 = vpop.f32.mrb[0].mxu0
  %637 = vmatprep.mubr.bf16.mxu0 0
  %638 = vmatmul.mubr.bf16.gmra.mrb[0].mxu0 %v589
  %v639 = vpop.f32.mrb[0].mxu0
  %v640 = vadd.f32 0.0, %v639
  %v641 = vpop.f32.mrb[0].mxu0
  %v642 = vpop.f32.mrb[0].mxu0
  %v643 = vadd.f32 0.0, %v642
  %v644 = vpop.f32.mrb[0].mxu0
  %645 = vmatprep.mubr.bf16.mxu0 0
  %646 = vmatmul.mubr.bf16.gmra.mrb[0].mxu0 %v592
  %v647 = vpop.f32.mrb[0].mxu0
  %v648 = vadd.f32 0.0, %v647
  %v649 = vpop.f32.mrb[0].mxu0
  %v650 = vpop.f32.mrb[0].mxu0
  %v651 = vadd.f32 0.0, %v650
  %v652 = vpop.f32.mrb[0].mxu0
  %653 = vmatprep.mubr.bf16.mxu0 0
  %654 = vmatmul.mubr.bf16.gmra.mrb[0].mxu0 %v595
  %v655 = vpop.f32.mrb[0].mxu0
  %v656 = vadd.f32 0.0, %v655
  %v657 = vpop.f32.mrb[0].mxu0
  %v658 = vpop.f32.mrb[0].mxu0
  %v659 = vadd.f32 0.0, %v658
  %v660 = vpop.f32.mrb[0].mxu0
  %661 = vdwg.mxu0
  %v662 = vadd.f32 %v535, %v632
  %v663 = vadd.f32 %v538, %v635
  %v664 = vadd.f32 %v543, %v640
  %v665 = vadd.f32 %v546, %v643
  %v666 = vadd.f32 %v551, %v648
  %v667 = vadd.f32 %v554, %v651
  %v668 = vadd.f32 %v559, %v656
  %v669 = vadd.f32 %v562, %v659
  %v670 = vpack.c.bf16 %v449, %v448
  %v671 = vpack.c.bf16 %v451, %v450
  %v672 = vpack.c.bf16 %v453, %v452
  %v673 = vpack.c.bf16 %v455, %v454
  %s674 = scalar_lea.vmem %s3, 16
  %v675 = vld [vmem:[%s674] sm:$0xf]
  %v676 = vld [vmem:[%s674 + $0x4] sm:$0xf]
  %v677 = vld [vmem:[%s674 + $0x8] sm:$0xf]
  %v678 = vld [vmem:[%s674 + $0xc] sm:$0xf]
  %v683 = vunpack.c.l.b16 %v675
  %v684 = vunpack.c.l.b16 %v676
  %v685 = vunpack.c.l.b16 %v677
  %v686 = vunpack.c.l.b16 %v678
  %v687 = vpack.c.b16 %v684, %v683
  %v688 = vpack.c.b16 %v686, %v685
  %v692 = vsel %vm487, %v670, 0
  %v695 = vsel %vm487, %v671, 0
  %v698 = vsel %vm487, %v672, 0
  %v701 = vsel %vm487, %v673, 0
  %703 = vmatprep.subr.bf16.mxu0 0
  %704 = vmatpush1.bf16.msra.mxu0 %v687
  %705 = vmatprep.subr.bf16.mxu0 0
  %706 = vmatpush1.bf16.msra.mxu0 %v688
  %707 = vmatprep.subr.bf16.mxu0 0
  %708 = vmatpush1.bf16.msra.mxu0 0
  %709 = vmatprep.subr.bf16.mxu0 0
  %710 = vmatpush1.bf16.msra.mxu0 0
  %711 = vmatprep.subr.bf16.mxu0 0
  %712 = vmatpush1.bf16.msra.mxu0 0
  %713 = vmatprep.subr.bf16.mxu0 0
  %714 = vmatpush1.bf16.msra.mxu0 0
  %715 = vmatprep.subr.bf16.mxu0 0
  %716 = vmatpush1.bf16.msra.mxu0 0
  %717 = vmatprep.subr.bf16.mxu0 0
  %718 = vmatpush1.bf16.msra.mxu0 0
  %719 = vmatprep.subr.bf16.mxu0 0
  %720 = vmatpush1.bf16.msra.mxu0 0
  %721 = vmatprep.subr.bf16.mxu0 0
  %722 = vmatpush1.bf16.msra.mxu0 0
  %723 = vmatprep.subr.bf16.mxu0 0
  %724 = vmatpush1.bf16.msra.mxu0 0
  %725 = vmatprep.subr.bf16.mxu0 0
  %726 = vmatpush1.bf16.msra.mxu0 0
  %727 = vmatprep.subr.bf16.mxu0 0
  %728 = vmatpush1.bf16.msra.mxu0 0
  %729 = vmatprep.subr.bf16.mxu0 0
  %730 = vmatpush1.bf16.msra.mxu0 0
  %731 = vmatprep.subr.bf16.mxu0 0
  %732 = vmatpush1.bf16.msra.mxu0 0
  %733 = vmatprep.subr.bf16.mxu0 0
  %734 = vmatpush1.bf16.msra.mxu0 0
  %735 = vmatprep.mubr.bf16.mxu0 0
  %736 = vmatmul.mubr.bf16.gmra.mrb[0].mxu0 %v692
  %v737 = vpop.f32.mrb[0].mxu0
  %v738 = vadd.f32 0.0, %v737
  %v739 = vpop.f32.mrb[0].mxu0
  %v740 = vpop.f32.mrb[0].mxu0
  %v741 = vadd.f32 0.0, %v740
  %v742 = vpop.f32.mrb[0].mxu0
  %743 = vmatprep.mubr.bf16.mxu0 0
  %744 = vmatmul.mubr.bf16.gmra.mrb[0].mxu0 %v695
  %v745 = vpop.f32.mrb[0].mxu0
  %v746 = vadd.f32 0.0, %v745
  %v747 = vpop.f32.mrb[0].mxu0
  %v748 = vpop.f32.mrb[0].mxu0
  %v749 = vadd.f32 0.0, %v748
  %v750 = vpop.f32.mrb[0].mxu0
  %751 = vmatprep.mubr.bf16.mxu0 0
  %752 = vmatmul.mubr.bf16.gmra.mrb[0].mxu0 %v698
  %v753 = vpop.f32.mrb[0].mxu0
  %v754 = vadd.f32 0.0, %v753
  %v755 = vpop.f32.mrb[0].mxu0
  %v756 = vpop.f32.mrb[0].mxu0
  %v757 = vadd.f32 0.0, %v756
  %v758 = vpop.f32.mrb[0].mxu0
  %759 = vmatprep.mubr.bf16.mxu0 0
  %760 = vmatmul.mubr.bf16.gmra.mrb[0].mxu0 %v701
  %v761 = vpop.f32.mrb[0].mxu0
  %v762 = vadd.f32 0.0, %v761
  %v763 = vpop.f32.mrb[0].mxu0
  %v764 = vpop.f32.mrb[0].mxu0
  %v765 = vadd.f32 0.0, %v764
  %v766 = vpop.f32.mrb[0].mxu0
  %767 = vdwg.mxu0
  %v768 = vadd.f32 %v662, %v738
  %v769 = vadd.f32 %v663, %v741
  %v770 = vadd.f32 %v664, %v746
  %v771 = vadd.f32 %v665, %v749
  %v772 = vadd.f32 %v666, %v754
  %v773 = vadd.f32 %v667, %v757
  %v774 = vadd.f32 %v668, %v762
  %v775 = vadd.f32 %v669, %v765
  %v776 = vpack.c.bf16 %v457, %v456
  %v777 = vpack.c.bf16 %v459, %v458
  %v778 = vpack.c.bf16 %v461, %v460
  %v779 = vpack.c.bf16 %v463, %v462
  %s780 = scalar_lea.vmem %s3, 32
  %v781 = vld [vmem:[%s780] sm:$0xf]
  %v782 = vld [vmem:[%s780 + $0x4] sm:$0xf]
  %v783 = vld [vmem:[%s780 + $0x8] sm:$0xf]
  %v784 = vld [vmem:[%s780 + $0xc] sm:$0xf]
  %v789 = vunpack.c.l.b16 %v781
  %v790 = vunpack.c.l.b16 %v782
  %v791 = vunpack.c.l.b16 %v783
  %v792 = vunpack.c.l.b16 %v784
  %v793 = vpack.c.b16 %v790, %v789
  %v794 = vpack.c.b16 %v792, %v791
  %v798 = vsel %vm487, %v776, 0
  %v801 = vsel %vm487, %v777, 0
  %v804 = vsel %vm487, %v778, 0
  %v807 = vsel %vm487, %v779, 0
  %809 = vmatprep.subr.bf16.mxu0 0
  %810 = vmatpush1.bf16.msra.mxu0 %v793
  %811 = vmatprep.subr.bf16.mxu0 0
  %812 = vmatpush1.bf16.msra.mxu0 %v794
  %813 = vmatprep.subr.bf16.mxu0 0
  %814 = vmatpush1.bf16.msra.mxu0 0
  %815 = vmatprep.subr.bf16.mxu0 0
  %816 = vmatpush1.bf16.msra.mxu0 0
  %817 = vmatprep.subr.bf16.mxu0 0
  %818 = vmatpush1.bf16.msra.mxu0 0
  %819 = vmatprep.subr.bf16.mxu0 0
  %820 = vmatpush1.bf16.msra.mxu0 0
  %821 = vmatprep.subr.bf16.mxu0 0
  %822 = vmatpush1.bf16.msra.mxu0 0
  %823 = vmatprep.subr.bf16.mxu0 0
  %824 = vmatpush1.bf16.msra.mxu0 0
  %825 = vmatprep.subr.bf16.mxu0 0
  %826 = vmatpush1.bf16.msra.mxu0 0
  %827 = vmatprep.subr.bf16.mxu0 0
  %828 = vmatpush1.bf16.msra.mxu0 0
  %829 = vmatprep.subr.bf16.mxu0 0
  %830 = vmatpush1.bf16.msra.mxu0 0
  %831 = vmatprep.subr.bf16.mxu0 0
  %832 = vmatpush1.bf16.msra.mxu0 0
  %833 = vmatprep.subr.bf16.mxu0 0
  %834 = vmatpush1.bf16.msra.mxu0 0
  %835 = vmatprep.subr.bf16.mxu0 0
  %836 = vmatpush1.bf16.msra.mxu0 0
  %837 = vmatprep.subr.bf16.mxu0 0
  %838 = vmatpush1.bf16.msra.mxu0 0
  %839 = vmatprep.subr.bf16.mxu0 0
  %840 = vmatpush1.bf16.msra.mxu0 0
  %841 = vmatprep.mubr.bf16.mxu0 0
  %842 = vmatmul.mubr.bf16.gmra.mrb[0].mxu0 %v798
  %v843 = vpop.f32.mrb[0].mxu0
  %v844 = vadd.f32 0.0, %v843
  %v845 = vpop.f32.mrb[0].mxu0
  %v846 = vpop.f32.mrb[0].mxu0
  %v847 = vadd.f32 0.0, %v846
  %v848 = vpop.f32.mrb[0].mxu0
  %849 = vmatprep.mubr.bf16.mxu0 0
  %850 = vmatmul.mubr.bf16.gmra.mrb[0].mxu0 %v801
  %v851 = vpop.f32.mrb[0].mxu0
  %v852 = vadd.f32 0.0, %v851
  %v853 = vpop.f32.mrb[0].mxu0
  %v854 = vpop.f32.mrb[0].mxu0
  %v855 = vadd.f32 0.0, %v854
  %v856 = vpop.f32.mrb[0].mxu0
  %857 = vmatprep.mubr.bf16.mxu0 0
  %858 = vmatmul.mubr.bf16.gmra.mrb[0].mxu0 %v804
  %v859 = vpop.f32.mrb[0].mxu0
  %v860 = vadd.f32 0.0, %v859
  %v861 = vpop.f32.mrb[0].mxu0
  %v862 = vpop.f32.mrb[0].mxu0
  %v863 = vadd.f32 0.0, %v862
  %v864 = vpop.f32.mrb[0].mxu0
  %865 = vmatprep.mubr.bf16.mxu0 0
  %866 = vmatmul.mubr.bf16.gmra.mrb[0].mxu0 %v807
  %v867 = vpop.f32.mrb[0].mxu0
  %v868 = vadd.f32 0.0, %v867
  %v869 = vpop.f32.mrb[0].mxu0
  %v870 = vpop.f32.mrb[0].mxu0
  %v871 = vadd.f32 0.0, %v870
  %v872 = vpop.f32.mrb[0].mxu0
  %873 = vdwg.mxu0
  %v874 = vadd.f32 %v768, %v844
  %v875 = vadd.f32 %v769, %v847
  %v876 = vadd.f32 %v770, %v852
  %v877 = vadd.f32 %v771, %v855
  %v878 = vadd.f32 %v772, %v860
  %v879 = vadd.f32 %v773, %v863
  %v880 = vadd.f32 %v774, %v868
  %v881 = vadd.f32 %v775, %v871
  %v882 = vld [vmem:[%s6] sm:$0x1]
  %v884 = vlaneseq
  %v885 = vshrl.u32 %v884, 7
  %v886 = vsub.s32 0, %v885
  %v887 = vrot.slane %v882, %v886
  %v889 = vmul.f32 %v874, %v887
  %v890 = vmul.f32 %v875, %v887
  %v891 = vmul.f32 %v876, %v887
  %v892 = vmul.f32 %v877, %v887
  %v893 = vmul.f32 %v878, %v887
  %v894 = vmul.f32 %v879, %v887
  %v895 = vmul.f32 %v880, %v887
  %v896 = vmul.f32 %v881, %v887
  %v897 = vld [vmem:[%s7] sm:$0x1]
  %v899 = vlaneseq
  %v900 = vshrl.u32 %v899, 7
  %v901 = vsub.s32 0, %v900
  %v902 = vrot.slane %v897, %v901
  %v904 = vmul.f32 %v34, %v902
  %v905 = vmul.f32 %v35, %v902
  %v906 = vmul.f32 %v36, %v902
  %v907 = vmul.f32 %v37, %v902
  %v908 = vmul.f32 %v38, %v902
  %v909 = vmul.f32 %v39, %v902
  %v910 = vmul.f32 %v40, %v902
  %v911 = vmul.f32 %v41, %v902
  %v912 = vadd.f32 %v889, %v904
  %v913 = vadd.f32 %v890, %v905
  %v914 = vadd.f32 %v891, %v906
  %v915 = vadd.f32 %v892, %v907
  %v916 = vadd.f32 %v893, %v908
  %v917 = vadd.f32 %v894, %v909
  %v918 = vadd.f32 %v895, %v910
  %v919 = vadd.f32 %v896, %v911
  %v920 = vsel %vm487, %v912, 0.0
  %921 = vadd.xlane.f32.xlu0 %v920
  %v922 = vpop.xlane.xlu0 %921
  %v923 = vsel %vm487, %v913, 0.0
  %924 = vadd.xlane.f32.xlu0 %v923
  %v925 = vpop.xlane.xlu0 %924
  %v926 = vsel %vm487, %v914, 0.0
  %927 = vadd.xlane.f32.xlu0 %v926
  %v928 = vpop.xlane.xlu0 %927
  %v929 = vsel %vm487, %v915, 0.0
  %930 = vadd.xlane.f32.xlu0 %v929
  %v931 = vpop.xlane.xlu0 %930
  %v932 = vsel %vm487, %v916, 0.0
  %933 = vadd.xlane.f32.xlu0 %v932
  %v934 = vpop.xlane.xlu0 %933
  %v935 = vsel %vm487, %v917, 0.0
  %936 = vadd.xlane.f32.xlu0 %v935
  %v937 = vpop.xlane.xlu0 %936
  %v938 = vsel %vm487, %v918, 0.0
  %939 = vadd.xlane.f32.xlu0 %v938
  %v940 = vpop.xlane.xlu0 %939
  %v941 = vsel %vm487, %v919, 0.0
  %942 = vadd.xlane.f32.xlu0 %v941
  %v943 = vpop.xlane.xlu0 %942
  %s944 = sld [smem:[#allocation2]]
  %v945 = vstv %s944
  %v946 = vadd.f32 %v922, %v945
  %v947 = vadd.f32 %v925, %v945
  %v948 = vadd.f32 %v928, %v945
  %v949 = vadd.f32 %v931, %v945
  %v950 = vadd.f32 %v934, %v945
  %v951 = vadd.f32 %v937, %v945
  %v952 = vadd.f32 %v940, %v945
  %v953 = vadd.f32 %v943, %v945
  %v954 = vxor.u32 %v946, 2147483648
  %v955 = vxor.u32 %v947, 2147483648
  %v956 = vxor.u32 %v948, 2147483648
  %v957 = vxor.u32 %v949, 2147483648
  %v958 = vxor.u32 %v950, 2147483648
  %v959 = vxor.u32 %v951, 2147483648
  %v960 = vxor.u32 %v952, 2147483648
  %v961 = vxor.u32 %v953, 2147483648
  %v962 = vmul.f32 %v954, 1.442695
  %v963 = vpow.pop %v962
  %v964 = vmul.f32 %v955, 1.442695
  %v965 = vpow.pop %v964
  %v966 = vmul.f32 %v956, 1.442695
  %v967 = vpow.pop %v966
  %v968 = vmul.f32 %v957, 1.442695
  %v969 = vpow.pop %v968
  %v970 = vmul.f32 %v958, 1.442695
  %v971 = vpow.pop %v970
  %v972 = vmul.f32 %v959, 1.442695
  %v973 = vpow.pop %v972
  %v974 = vmul.f32 %v960, 1.442695
  %v975 = vpow.pop %v974
  %v976 = vmul.f32 %v961, 1.442695
  %v977 = vpow.pop %v976
  %v978 = vadd.f32 %v963, 1.0
  %v979 = vadd.f32 %v965, 1.0
  %v980 = vadd.f32 %v967, 1.0
  %v981 = vadd.f32 %v969, 1.0
  %v982 = vadd.f32 %v971, 1.0
  %v983 = vadd.f32 %v973, 1.0
  %v984 = vadd.f32 %v975, 1.0
  %v985 = vadd.f32 %v977, 1.0
  %v986 = vrcp.pop %v978
  %v987 = vmul.f32 1.0, %v986
  %v988 = vrcp.pop %v979
  %v989 = vmul.f32 1.0, %v988
  %v990 = vrcp.pop %v980
  %v991 = vmul.f32 1.0, %v990
  %v992 = vrcp.pop %v981
  %v993 = vmul.f32 1.0, %v992
  %v994 = vrcp.pop %v982
  %v995 = vmul.f32 1.0, %v994
  %v996 = vrcp.pop %v983
  %v997 = vmul.f32 1.0, %v996
  %v998 = vrcp.pop %v984
  %v999 = vmul.f32 1.0, %v998
  %v1000 = vrcp.pop %v985
  %v1001 = vmul.f32 1.0, %v1000
  %v1002 = vtanh.pop %v874
  %v1003 = vtanh.pop %v875
  %v1004 = vtanh.pop %v876
  %v1005 = vtanh.pop %v877
  %v1006 = vtanh.pop %v878
  %v1007 = vtanh.pop %v879
  %v1008 = vtanh.pop %v880
  %v1009 = vtanh.pop %v881
  %v1010 = vmul.f32 %v1002, %v987
  %v1011 = vmul.f32 %v1003, %v989
  %v1012 = vmul.f32 %v1004, %v991
  %v1013 = vmul.f32 %v1005, %v993
  %v1014 = vmul.f32 %v1006, %v995
  %v1015 = vmul.f32 %v1007, %v997
  %v1016 = vmul.f32 %v1008, %v999
  %v1017 = vmul.f32 %v1009, %v1001
  %v1018 = vsub.f32 1.0, %v987
  %v1019 = vsub.f32 1.0, %v989
  %v1020 = vsub.f32 1.0, %v991
  %v1021 = vsub.f32 1.0, %v993
  %v1022 = vsub.f32 1.0, %v995
  %v1023 = vsub.f32 1.0, %v997
  %v1024 = vsub.f32 1.0, %v999
  %v1025 = vsub.f32 1.0, %v1001
  %v1026 = vmul.f32 %v34, %v1018
  %v1027 = vmul.f32 %v35, %v1019
  %v1028 = vmul.f32 %v36, %v1020
  %v1029 = vmul.f32 %v37, %v1021
  %v1030 = vmul.f32 %v38, %v1022
  %v1031 = vmul.f32 %v39, %v1023
  %v1032 = vmul.f32 %v40, %v1024
  %v1033 = vmul.f32 %v41, %v1025
  %v1034 = vadd.f32 %v1010, %v1026
  %v1035 = vadd.f32 %v1011, %v1027
  %v1036 = vadd.f32 %v1012, %v1028
  %v1037 = vadd.f32 %v1013, %v1029
  %v1038 = vadd.f32 %v1014, %v1030
  %v1039 = vadd.f32 %v1015, %v1031
  %v1040 = vadd.f32 %v1016, %v1032
  %v1041 = vadd.f32 %v1017, %v1033
  %1042 = vst.msk [vmem:[%s9] sm:$0xff] %vm487, %v1034
  %1043 = vst.msk [vmem:[%s9 + $0x8] sm:$0xff] %vm487, %v1035
  %1044 = vst.msk [vmem:[%s9 + $0x10] sm:$0xff] %vm487, %v1036
  %1045 = vst.msk [vmem:[%s9 + $0x18] sm:$0xff] %vm487, %v1037
  %1046 = vst.msk [vmem:[%s9 + $0x20] sm:$0xff] %vm487, %v1038
  %1047 = vst.msk [vmem:[%s9 + $0x28] sm:$0xff] %vm487, %v1039
  %1048 = vst.msk [vmem:[%s9 + $0x30] sm:$0xff] %vm487, %v1040
  %1049 = vst.msk [vmem:[%s9 + $0x38] sm:$0xff] %vm487, %v1041
  // Predicated region
  $region38: #{gated_rgcn_pallas.1} parent=0 // pred_check
    _
  $region39: #{gated_rgcn_pallas.1} parent=0 // pred_check_branch
    %1051 = sbr.rel (0) target = $region41
  $region40: #{gated_rgcn_pallas.1} parent=0 // pred_region
    _
  $region41: #{gated_rgcn_pallas.1} parent=0 // pred_fallthru
    _
  // Predicated region
  $region42: #{gated_rgcn_pallas.1} parent=0 // pred_check
    _
  $region43: #{gated_rgcn_pallas.1} parent=0 // pred_check_branch
    %1053 = sbr.rel (0) target = $region45
  $region44: #{gated_rgcn_pallas.1} parent=0 // pred_region
    _
  $region45: #{gated_rgcn_pallas.1} parent=0 // pred_fallthru
    _

</llo_original>
